<compile_context>
chip_gen: v5e
topology: v5e:2x2
jax: 0.10.0
libtpu: 0.0.40
codegen_flags: <defaults>
</compile_context>

<pallas_src>
import jax
import jax.numpy as jnp
from jax.experimental import pallas as pl
from jax.experimental.pallas import tpu as pltpu


def _round_up(x, m):
    return (x + m - 1) // m * m


def _mlp_kernel(noise_ref, w1_ref, b1_ref, w2_ref, b2_ref, out_ref):
    """One batch tile: sigmoid(relu(x @ W1 + b1) @ W2 + b2).

    MXU matmuls with bf16 operands / f32 accumulation; bias + ReLU on the VPU,
    sigmoid via a single tanh on the EUP.
    """
    x = noise_ref[...].astype(jnp.bfloat16)                              # [tb, K]
    h = jnp.dot(x, w1_ref[...], preferred_element_type=jnp.float32)      # [tb, H]
    h = jnp.maximum(h + b1_ref[...], 0.0)                                # bias+ReLU
    y = jnp.dot(h.astype(jnp.bfloat16), w2_ref[...],
                preferred_element_type=jnp.float32)                      # [tb, N]
    y = y + b2_ref[...]
    # sigmoid(y) = 0.5 * (1 + tanh(y/2)) — stable, single EUP op per element.
    out_ref[...] = (0.5 * (jnp.tanh(0.5 * y) + 1.0)).astype(out_ref.dtype)


def simple_diffusion_generator(noise, w1, b1, w2, b2, *, tile_b=2048):
    """noise: [B, noise_dim] -> [B, input_dim] f32 (= sigmoid(fc2(relu(fc1(noise))))).

    tile_b: batch rows processed per grid step (sweep 2048-8192 for huge B).
    Per-step VMEM at tile_b=2048 is ~0.9 MiB double-buffered — well under every
    generation's default scoped VMEM limit, so no vmem_limit bump is needed.
    """
    batch, noise_dim = noise.shape
    hidden = w1.shape[1]
    input_dim = w2.shape[1]

    # Tiny one-time casts; these blocks stay VMEM-resident across all grid steps.
    w1b = w1.astype(jnp.bfloat16)
    w2b = w2.astype(jnp.bfloat16)
    b1f = b1.reshape(1, hidden).astype(jnp.float32)
    b2f = b2.reshape(1, input_dim).astype(jnp.float32)

    # Batch tile: multiple of 8 sublanes; keep >= 2 grid steps when the batch is
    # big enough so both v7x TensorCores get work.  grid uses pl.cdiv and the
    # ragged last tile is handled by Pallas (OOB rows are dropped on store), so
    # we never pad/DMA dead output rows.
    batch8 = _round_up(batch, 8)
    half = _round_up(pl.cdiv(batch8, 2), 8)
    tb = max(8, min(int(tile_b), half))
    grid = (pl.cdiv(batch, tb),)

    noise_f32 = noise.astype(jnp.float32)

    # Advisory cost hint so XLA schedules surrounding ops around the call.
    flops = 2 * batch * (noise_dim * hidden + hidden * input_dim)
    bytes_accessed = (batch * noise_dim * 4 + w1b.size * 2 + w2b.size * 2
                      + (b1f.size + b2f.size) * 4 + batch * input_dim * 4)

    out = pl.pallas_call(
        _mlp_kernel,
        out_shape=jax.ShapeDtypeStruct((batch, input_dim), jnp.float32),
        grid=grid,
        in_specs=[
            pl.BlockSpec((tb, noise_dim), lambda i: (i, 0)),       # streamed
            pl.BlockSpec((noise_dim, hidden), lambda i: (0, 0)),   # VMEM-resident
            pl.BlockSpec((1, hidden), lambda i: (0, 0)),           # VMEM-resident
            pl.BlockSpec((hidden, input_dim), lambda i: (0, 0)),   # VMEM-resident
            pl.BlockSpec((1, input_dim), lambda i: (0, 0)),        # VMEM-resident
        ],
        out_specs=pl.BlockSpec((tb, input_dim), lambda i: (i, 0)),
        compiler_params=pltpu.CompilerParams(
            dimension_semantics=("parallel",)),
        cost_estimate=pl.CostEstimate(
            flops=flops,
            transcendentals=batch * input_dim,
            bytes_accessed=bytes_accessed),
    )(noise_f32, w1b, b1f, w2b, b2f)

    return out


def init_params(key, noise_dim=32, hidden=64, input_dim=16):
    """Deterministic synthetic parameters (PyTorch-Linear-like uniform init),
    stored as [in_features, out_features] for y = x @ W + b."""
    k1, k2, k3, k4 = jax.random.split(key, 4)
    bound1 = 1.0 / jnp.sqrt(noise_dim)
    bound2 = 1.0 / jnp.sqrt(hidden)
    w1 = jax.random.uniform(k1, (noise_dim, hidden), jnp.float32, -bound1, bound1)
    b1 = jax.random.uniform(k2, (1, hidden), jnp.float32, -bound1, bound1)
    w2 = jax.random.uniform(k3, (hidden, input_dim), jnp.float32, -bound2, bound2)
    b2 = jax.random.uniform(k4, (1, input_dim), jnp.float32, -bound2, bound2)
    return w1, b1, w2, b2


if __name__ == "__main__":
    key = jax.random.PRNGKey(0)
    k_noise, k_params = jax.random.split(key)

    batch, noise_dim, hidden, input_dim = 2, 32, 64, 16
    noise = jax.random.normal(k_noise, (batch, noise_dim), jnp.float32)
    w1, b1, w2, b2 = init_params(k_params, noise_dim=noise_dim, hidden=hidden,
                                 input_dim=input_dim)

    out = simple_diffusion_generator(noise, w1, b1, w2, b2)
    jax.block_until_ready(out)

    # Pure-JAX reference with the same bf16 operand quantization as the kernel.
    nq = noise.astype(jnp.bfloat16).astype(jnp.float32)
    w1q = w1.astype(jnp.bfloat16).astype(jnp.float32)
    w2q = w2.astype(jnp.bfloat16).astype(jnp.float32)
    h_ref = jnp.maximum(nq @ w1q + b1, 0.0)
    ref = jax.nn.sigmoid(h_ref.astype(jnp.bfloat16).astype(jnp.float32) @ w2q + b2)

    assert out.shape == (batch, input_dim)
    assert jnp.allclose(out, ref, atol=5e-3, rtol=5e-3), \
        float(jnp.max(jnp.abs(out - ref)))

    print("KERNEL_OK")
</pallas_src>

<mosaic_0001>
module attributes {stable_mosaic.version = 11 : i64} {
  func.func @_mlp_kernel(%arg0: i32, %arg1: memref<8x32xf32, #tpu.memory_space<vmem>>, %arg2: memref<32x64xbf16, #tpu.memory_space<vmem>>, %arg3: memref<1x64xf32, #tpu.memory_space<vmem>>, %arg4: memref<64x16xbf16, #tpu.memory_space<vmem>>, %arg5: memref<1x16xf32, #tpu.memory_space<vmem>>, %arg6: memref<8x16xf32, #tpu.memory_space<vmem>>) attributes {dimension_semantics = [#tpu.dimension_semantics<parallel>], iteration_bounds = array<i64: 1>, scalar_prefetch = 0 : i64, scratch_operands = 0 : i64, tpu.core_type = #tpu.core_type<tc>, window_params = [{transform_indices = @transform_0, window_bounds = array<i64: 8, 32>}, {pipeline_mode = #tpu.pipeline_mode<synchronous>, transform_indices = @transform_1, window_bounds = array<i64: 32, 64>}, {pipeline_mode = #tpu.pipeline_mode<synchronous>, transform_indices = @transform_2, window_bounds = array<i64: 1, 64>}, {pipeline_mode = #tpu.pipeline_mode<synchronous>, transform_indices = @transform_3, window_bounds = array<i64: 64, 16>}, {pipeline_mode = #tpu.pipeline_mode<synchronous>, transform_indices = @transform_4, window_bounds = array<i64: 1, 16>}, {transform_indices = @transform_5, window_bounds = array<i64: 8, 16>}]} {
    %c0 = arith.constant 0 : index
    %c0_0 = arith.constant 0 : index
    %0 = vector.load %arg1[%c0, %c0_0] : memref<8x32xf32, #tpu.memory_space<vmem>>, vector<8x32xf32>
    %1 = arith.truncf %0 : vector<8x32xf32> to vector<8x32xbf16>
    %c0_1 = arith.constant 0 : index
    %c0_2 = arith.constant 0 : index
    %2 = vector.load %arg2[%c0_1, %c0_2] : memref<32x64xbf16, #tpu.memory_space<vmem>>, vector<32x64xbf16>
    %cst = arith.constant dense<0.000000e+00> : vector<8x64xf32>
    %3 = tpu.matmul %1, %2, %cst {dimension_numbers = #tpu.dot_dimension_numbers<[1], [0], [0], [1], [0, 0, 1, 1], [], []>} : vector<8x32xbf16>, vector<32x64xbf16>, vector<8x64xf32> -> vector<8x64xf32>
    %c0_3 = arith.constant 0 : index
    %c0_4 = arith.constant 0 : index
    %4 = vector.load %arg3[%c0_3, %c0_4] : memref<1x64xf32, #tpu.memory_space<vmem>>, vector<1x64xf32>
    %5 = vector.broadcast %4 : vector<1x64xf32> to vector<8x64xf32>
    %6 = arith.addf %3, %5 : vector<8x64xf32>
    %cst_5 = arith.constant 0.000000e+00 : f32
    %7 = vector.broadcast %cst_5 : f32 to vector<8x64xf32>
    %8 = arith.maximumf %6, %7 : vector<8x64xf32>
    %9 = arith.truncf %8 : vector<8x64xf32> to vector<8x64xbf16>
    %c0_6 = arith.constant 0 : index
    %c0_7 = arith.constant 0 : index
    %10 = vector.load %arg4[%c0_6, %c0_7] : memref<64x16xbf16, #tpu.memory_space<vmem>>, vector<64x16xbf16>
    %cst_8 = arith.constant dense<0.000000e+00> : vector<8x16xf32>
    %11 = tpu.matmul %9, %10, %cst_8 {dimension_numbers = #tpu.dot_dimension_numbers<[1], [0], [0], [1], [0, 0, 1, 1], [], []>} : vector<8x64xbf16>, vector<64x16xbf16>, vector<8x16xf32> -> vector<8x16xf32>
    %c0_9 = arith.constant 0 : index
    %c0_10 = arith.constant 0 : index
    %12 = vector.load %arg5[%c0_9, %c0_10] : memref<1x16xf32, #tpu.memory_space<vmem>>, vector<1x16xf32>
    %13 = vector.broadcast %12 : vector<1x16xf32> to vector<8x16xf32>
    %14 = arith.addf %11, %13 : vector<8x16xf32>
    %cst_11 = arith.constant 5.000000e-01 : f32
    %15 = vector.broadcast %cst_11 : f32 to vector<8x16xf32>
    %16 = arith.mulf %15, %14 : vector<8x16xf32>
    %17 = math.tanh %16 : vector<8x16xf32>
    %cst_12 = arith.constant 1.000000e+00 : f32
    %18 = vector.broadcast %cst_12 : f32 to vector<8x16xf32>
    %19 = arith.addf %17, %18 : vector<8x16xf32>
    %cst_13 = arith.constant 5.000000e-01 : f32
    %20 = vector.broadcast %cst_13 : f32 to vector<8x16xf32>
    %21 = arith.mulf %20, %19 : vector<8x16xf32>
    %c0_14 = arith.constant 0 : index
    %c0_15 = arith.constant 0 : index
    %22 = vector.load %arg6[%c0_14, %c0_15] : memref<8x16xf32, #tpu.memory_space<vmem>>, vector<8x16xf32>
    tpu.vector_store %arg6[%c0_14, %c0_15], %21 {strides = array<i32>} : memref<8x16xf32, #tpu.memory_space<vmem>>, vector<8x16xf32>,
    return
  }
  func.func @transform_0(%arg0: i32) -> (i32, i32) {
    %c0_i32 = arith.constant 0 : i32
    %c0_i32_0 = arith.constant 0 : i32
    return %arg0, %c0_i32 : i32, i32
  }
  func.func @transform_1(%arg0: i32) -> (i32, i32) {
    %c0_i32 = arith.constant 0 : i32
    %c0_i32_0 = arith.constant 0 : i32
    %c0_i32_1 = arith.constant 0 : i32
    return %c0_i32, %c0_i32_0 : i32, i32
  }
  func.func @transform_2(%arg0: i32) -> (i32, i32) {
    %c0_i32 = arith.constant 0 : i32
    %c0_i32_0 = arith.constant 0 : i32
    %c0_i32_1 = arith.constant 0 : i32
    return %c0_i32, %c0_i32_0 : i32, i32
  }
  func.func @transform_3(%arg0: i32) -> (i32, i32) {
    %c0_i32 = arith.constant 0 : i32
    %c0_i32_0 = arith.constant 0 : i32
    %c0_i32_1 = arith.constant 0 : i32
    return %c0_i32, %c0_i32_0 : i32, i32
  }
  func.func @transform_4(%arg0: i32) -> (i32, i32) {
    %c0_i32 = arith.constant 0 : i32
    %c0_i32_0 = arith.constant 0 : i32
    %c0_i32_1 = arith.constant 0 : i32
    return %c0_i32, %c0_i32_0 : i32, i32
  }
  func.func @transform_5(%arg0: i32) -> (i32, i32) {
    %c0_i32 = arith.constant 0 : i32
    %c0_i32_0 = arith.constant 0 : i32
    return %arg0, %c0_i32 : i32, i32
  }
}

</mosaic_0001>

<llo_original>
// kernel: tpu_custom_call.1
$region0: #{tpu_custom_call.1}
  #allocation0 [shape = 'u32[]', space=smem, size = 0x4, offset = 0x4, fixed_abs, tag = 'smem constant byte address 0x4 - core index']
  #allocation1 [shape = 'u32[72,128]{1,0:T(1,128)}', space=vmem, size = 0x9000, scoped, tag = 'internal scratch']
  %s0 = inlined_call_operand.vmem [shape: f32[2,32], index: 0, kind: input, shape index: {}]
  %s1 = inlined_call_operand.vmem [shape: bf16[32,64], index: 1, kind: input, shape index: {}]
  %s2 = inlined_call_operand.vmem [shape: f32[1,64], index: 2, kind: input, shape index: {}]
  %s3 = inlined_call_operand.vmem [shape: bf16[64,16], index: 3, kind: input, shape index: {}]
  %s4 = inlined_call_operand.vmem [shape: f32[1,16], index: 4, kind: input, shape index: {}]
  %s5 = inlined_call_operand.hbm [shape: f32[2,16], index: 5, kind: output, shape index: {}]
  %s6 = sld [smem:[#allocation0]]
  $region30: #{tpu_custom_call.1} parent=0
    _
  %s8 = ssub.s32 1, %s6
  %s9 = scalar_select 0, %s8, %s6
  $region1: #{tpu_custom_call.1} parent=0
    #allocation2 [shape = 'u8[4096]{0}', space=vmem, size = 0x1000, scoped, tag = 'output window, operand 0, single buffered']
    #allocation3 [shape = 's32[1]{0}', space=sflag, size = 0x4, scoped, tag = 'scoped memory for tpu_custom_call.1']
    %10 = vsyncpa [#allocation3], 0
    // Predicated region
    $region2: #{tpu_custom_call.1} parent=1 // pred_check
      _
    $region3: #{tpu_custom_call.1} parent=1 // pred_check_branch
      %12 = sbr.rel (0) target = $region5
    $region4: #{tpu_custom_call.1} parent=1 // pred_region
      _
    $region5: #{tpu_custom_call.1} parent=1 // pred_fallthru
      _
    // Predicated region
    $region6: #{tpu_custom_call.1} parent=1 // pred_check
      _
    $region7: #{tpu_custom_call.1} parent=1 // pred_check_branch
      %14 = sbr.rel (0) target = $region9
    $region8: #{tpu_custom_call.1} parent=1 // pred_region
      _
    $region9: #{tpu_custom_call.1} parent=1 // pred_fallthru
      _
    // Predicated region
    $region10: #{tpu_custom_call.1} parent=1 // pred_check
      _
    $region11: #{tpu_custom_call.1} parent=1 // pred_check_branch
      %16 = sbr.rel (0) target = $region13
    $region12: #{tpu_custom_call.1} parent=1 // pred_region
      _
    $region13: #{tpu_custom_call.1} parent=1 // pred_fallthru
      _
    // Predicated region
    $region14: #{tpu_custom_call.1} parent=1 // pred_check
      _
    $region15: #{tpu_custom_call.1} parent=1 // pred_check_branch
      %18 = sbr.rel (0) target = $region17
    $region16: #{tpu_custom_call.1} parent=1 // pred_region
      _
    $region17: #{tpu_custom_call.1} parent=1 // pred_fallthru
      _
    // Predicated region
    $region18: #{tpu_custom_call.1} parent=1 // pred_check
      _
    $region19: #{tpu_custom_call.1} parent=1 // pred_check_branch
      %20 = sbr.rel (0) target = $region21
    $region20: #{tpu_custom_call.1} parent=1 // pred_region
      _
    $region21: #{tpu_custom_call.1} parent=1 // pred_fallthru
      _
    %v22 = vld [vmem:[%s0] sm:$0xff]
    %v23 = vpack.c.bf16 %v22, %v22
    %v24 = vld [vmem:[%s1] sm:$0xf]
    %v25 = vld [vmem:[%s1 + $0x4] sm:$0xf]
    %v26 = vld [vmem:[%s1 + $0x8] sm:$0xf]
    %v27 = vld [vmem:[%s1 + $0xc] sm:$0xf]
    %v28 = vld [vmem:[%s2] sm:$0x1]
    %v30 = vperm.slane %v28, 0
    %v36 = vunpack.c.l.b16 %v24
    %v37 = vunpack.c.l.b16 %v25
    %v38 = vunpack.c.l.b16 %v26
    %v39 = vunpack.c.l.b16 %v27
    %v40 = vpack.c.b16 %v37, %v36
    %v41 = vpack.c.b16 %v39, %v38
    %vm44 = vcmask 261120
    %v46 = vsel %vm44, %v23, 0
    %48 = vmatpush.bf16.msra.mxu0 0
    %49 = vmatpush.bf16.msra.mxu0 0
    %50 = vmatpush.bf16.msra.mxu0 0
    %51 = vmatpush.bf16.msra.mxu0 0
    %52 = vmatpush.bf16.msra.mxu0 0
    %53 = vmatpush.bf16.msra.mxu0 0
    %54 = vmatpush.bf16.msra.mxu0 %v41
    %55 = vmatpush.bf16.msra.mxu0 %v40
    %56 = vmatmul.bf16.gmra.mxu0 %v46
    %v57 = vpop.f32.mrf.mxu0
    %v58 = vadd.f32 %v30, %v57
    %v59 = vpop.f32.mrf.mxu0
    %60 = vdwg.mxu0
    %v61 = vmax.f32 %v58, 0.0
    %v62 = vpack.c.bf16 %v61, %v61
    %v63 = vld [vmem:[%s3] sm:$0xf]
    %v64 = vld [vmem:[%s3 + $0x4] sm:$0xf]
    %v65 = vld [vmem:[%s3 + $0x8] sm:$0xf]
    %v66 = vld [vmem:[%s3 + $0xc] sm:$0xf]
    %v67 = vld [vmem:[%s3 + $0x10] sm:$0xf]
    %v68 = vld [vmem:[%s3 + $0x14] sm:$0xf]
    %v69 = vld [vmem:[%s3 + $0x18] sm:$0xf]
    %v70 = vld [vmem:[%s3 + $0x1c] sm:$0xf]
    %v71 = vld [vmem:[%s4] sm:$0x1]
    %v73 = vperm.slane %v71, 0
    %v83 = vunpack.c.l.b16 %v63
    %v84 = vunpack.c.l.b16 %v64
    %v85 = vunpack.c.l.b16 %v65
    %v86 = vunpack.c.l.b16 %v66
    %v87 = vunpack.c.l.b16 %v67
    %v88 = vunpack.c.l.b16 %v68
    %v89 = vunpack.c.l.b16 %v69
    %v90 = vunpack.c.l.b16 %v70
    %v91 = vpack.c.b16 %v84, %v83
    %v92 = vpack.c.b16 %v86, %v85
    %v93 = vpack.c.b16 %v88, %v87
    %v94 = vpack.c.b16 %v90, %v89
    %vm99 = vcmask 523264
    %v101 = vsel %vm99, %v62, 0
    %103 = vmatpush.bf16.msra.mxu0 0
    %104 = vmatpush.bf16.msra.mxu0 0
    %105 = vmatpush.bf16.msra.mxu0 0
    %106 = vmatpush.bf16.msra.mxu0 0
    %107 = vmatpush.bf16.msra.mxu0 %v94
    %108 = vmatpush.bf16.msra.mxu0 %v93
    %109 = vmatpush.bf16.msra.mxu0 %v92
    %110 = vmatpush.bf16.msra.mxu0 %v91
    %111 = vmatmul.bf16.gmra.mxu0 %v101
    %v112 = vpop.f32.mrf.mxu0
    %v113 = vadd.f32 %v73, %v112
    %v114 = vpop.f32.mrf.mxu0
    %115 = vdwg.mxu0
    %v116 = vmul.f32 %v113, 0.5
    %v117 = vtanh.pop %v116
    %v118 = vadd.f32 %v117, 1.0
    %v119 = vmul.f32 %v118, 0.5
    %vm120 = vcmask 130048
    %121 = vst.msk [vmem:[#allocation2] sm:$0xff] %vm120, %v119
    // Predicated region
    $region22: #{tpu_custom_call.1} parent=1 // pred_check
      _
    $region23: #{tpu_custom_call.1} parent=1 // pred_check_branch
      %123 = sbr.rel (0) target = $region25
    $region24: #{tpu_custom_call.1} parent=1 // pred_region
      %125 = vsyncadd [#allocation3], 96
      %s126 = sshll.u32 [#allocation2], 4
      %s127 = int_to_ptr.vmem [resolvable:$true] %s126
      %s128 = sshll.u32 %s5, 4
      %s129 = int_to_ptr.hbm [resolvable:$true] %s128
      %134 = dma.vmem_to_hbm [thread:$0]  %s127, 32, %s129, [#allocation3], 32, 32, 2
    $region25: #{tpu_custom_call.1} parent=1 // pred_fallthru
      _
    // Predicated region
    $region26: #{tpu_custom_call.1} parent=1 // pred_check
      _
    $region27: #{tpu_custom_call.1} parent=1 // pred_check_branch
      %136 = sbr.rel (0) target = $region29
    $region28: #{tpu_custom_call.1} parent=1 // pred_region
      %138 = dma.done [#allocation3], 128
    $region29: #{tpu_custom_call.1} parent=1 // pred_fallthru
      _
    %139 = vsyncpa [#allocation3], 1

</llo_original>
